<compile_context>
chip_gen: v6e
topology: v6e:2x2x1
jax: 0.10.0
libtpu: 0.0.40
codegen_flags: <defaults>
</compile_context>

<pallas_src>
import math
from functools import partial
from typing import Any, NamedTuple

import jax
import jax.numpy as jnp
from jax.experimental import pallas as pl
from jax.experimental.pallas import tpu as pltpu


def _round_up(x: int, m: int) -> int:
    return ((x + m - 1) // m) * m


# ----------------------------- kernels --------------------------------------


def _linear_kernel_single_k(x_ref, w_ref, b_ref, o_ref):
    """Whole K reduction in one MXU pass; bias in f32; single cast at store."""
    o_ref[...] = (jnp.dot(x_ref[...], w_ref[...],
                          preferred_element_type=jnp.float32)
                  + b_ref[...]).astype(o_ref.dtype)


def _linear_kernel_multi_k_f32out(x_ref, w_ref, b_ref, o_ref):
    """Multi-step K, f32 output: accumulate directly in the resident output
    block (no scratch, no final acc->out copy)."""
    k = pl.program_id(2)
    p = jnp.dot(x_ref[...], w_ref[...], preferred_element_type=jnp.float32)

    @pl.when(k == 0)
    def _():
        o_ref[...] = p + b_ref[...]

    @pl.when(k != 0)
    def _():
        o_ref[...] += p


def _linear_kernel_multi_k_acc(x_ref, w_ref, b_ref, o_ref, acc_ref):
    """Multi-step K, narrow output dtype: f32 VMEM accumulator, first step
    writes (not zero+add), cast once at the final K step."""
    k = pl.program_id(2)
    p = jnp.dot(x_ref[...], w_ref[...], preferred_element_type=jnp.float32)

    @pl.when(k == 0)
    def _():
        acc_ref[...] = p

    @pl.when(k != 0)
    def _():
        acc_ref[...] += p

    @pl.when(k == pl.num_programs(2) - 1)
    def _():
        o_ref[...] = (acc_ref[...] + b_ref[...]).astype(o_ref.dtype)


# ----------------------------- planning -------------------------------------


class LinearPlan(NamedTuple):
    batch: int
    in_size: int
    out_size: int
    M: int
    N: int
    K: int
    tm: int
    tn: int
    tk: int
    compute_dtype: Any
    out_dtype: Any
    vmem_limit: int
    w_buffers: int


def plan_linear(batch: int, in_size: int, out_size: int, *,
                x_dtype=jnp.float32, use_bf16: bool = True,
                max_tm: int = 512, max_tn: int = 512, max_tk: int | None = None,
                min_parallel_tiles: int = 2,        # v7x: 2 TensorCores/chip
                vmem_budget_bytes: int = 40 << 20,  # keep well under v7x 64 MiB
                w_buffers: int = 2) -> LinearPlan:
    """Choose tile sizes / padded sizes once per (batch, in, out) shape."""
    out_dtype = jnp.dtype(x_dtype)
    compute_dtype = jnp.dtype(jnp.bfloat16) if use_bf16 else out_dtype
    cb = compute_dtype.itemsize
    ob = out_dtype.itemsize

    m_gran = 16 if cb == 2 else 8                  # sublane packing
    # 256-aligned N tiles keep the 2x256x256 MXU (v6e/v7x) fully fed;
    # 128 is the v5e floor and the minimum lane tile.
    n_gran = 256 if out_size > 128 else 128

    tm = min(max_tm, _round_up(batch, m_gran))
    tn = _round_up(min(max_tn, _round_up(out_size, n_gran)), 128)

    k_full = _round_up(in_size, 128)

    def footprint(tm_, tn_, tk_):
        return (2 * (tm_ * tk_ + tk_ * tn_) * cb   # double-buffered x / w
                + 2 * tm_ * tn_ * ob               # double-buffered out
                + tm_ * tn_ * 4                    # f32 accumulator (worst case)
                + 2 * tn_ * 4)                     # bias

    tk_cap = k_full if max_tk is None else min(max_tk, k_full)
    if tk_cap >= k_full and footprint(tm, tn, k_full) <= vmem_budget_bytes:
        tk = k_full                                # collapse K to a single step
    else:
        tk = 128
        for cand in (1024, 512, 256, 128):
            if cand <= tk_cap and footprint(tm, tn, cand) <= vmem_budget_bytes:
                tk = cand
                break

    # v7x megacore: guarantee >= min_parallel_tiles on the (M, N) grid.
    def n_parallel(tm_, tn_):
        return ((_round_up(batch, tm_) // tm_)
                * (_round_up(out_size, tn_) // tn_))

    while n_parallel(tm, tn) < min_parallel_tiles:
        if tn > 128:
            tn = max(128, _round_up(tn // 2, 128))
        elif tm > m_gran:
            tm = max(m_gran, _round_up(tm // 2, m_gran))
        else:
            break

    M = _round_up(batch, tm)
    N = _round_up(out_size, tn)
    K = _round_up(in_size, tk)
    k_steps = K // tk

    needs_acc = (k_steps > 1) and (out_dtype != jnp.dtype(jnp.float32))
    need = (2 * (tm * tk + tk * tn) * cb + 2 * tm * tn * ob
            + (tm * tn * 4 if needs_acc else 0) + 2 * tn * 4)
    # Real footprint + slack for deeper buffering, capped below v7x's 64 MiB
    # physical VMEM per TensorCore (v5e/v6e have 128 MiB, so this is safe).
    vmem_limit = int(min(56 << 20, max(2 * need, 8 << 20)))

    return LinearPlan(batch, in_size, out_size, M, N, K, tm, tn, tk,
                      compute_dtype, out_dtype, vmem_limit, w_buffers)


def prepare_linear_params(plan: LinearPlan, w: jax.Array, b: jax.Array):
    """Cast + pad the reused weight/bias ONCE, outside the per-call forward.

    w: (input_size, output_size)  (= torch Linear weight, transposed)
    b: (output_size,) or (1, output_size)
    """
    in_size, out_size = w.shape
    assert (in_size, out_size) == (plan.in_size, plan.out_size)
    wp = w.astype(plan.compute_dtype)
    if wp.shape != (plan.K, plan.N):
        wp = jnp.pad(wp, ((0, plan.K - in_size), (0, plan.N - out_size)))
    bp = jnp.reshape(b, (1, out_size)).astype(jnp.float32)
    if bp.shape != (1, plan.N):
        bp = jnp.pad(bp, ((0, 0), (0, plan.N - out_size)))
    return wp, bp


# ----------------------------- forward --------------------------------------


@partial(jax.jit, static_argnums=0)
def nn_pattern_forward(plan: LinearPlan, x: jax.Array,
                       wp: jax.Array, bp: jax.Array) -> jax.Array:
    """Forward pass: y = x @ w + b, with w/b already prepared for `plan`."""
    batch, in_size = x.shape
    assert (batch, in_size) == (plan.batch, plan.in_size)
    assert wp.shape == (plan.K, plan.N) and bp.shape == (1, plan.N)

    xp = x.astype(plan.compute_dtype)
    if (batch, in_size) != (plan.M, plan.K):
        xp = jnp.pad(xp, ((0, plan.M - batch), (0, plan.K - in_size)))

    k_steps = plan.K // plan.tk
    cb = plan.compute_dtype.itemsize
    ob = plan.out_dtype.itemsize
    f32_out = plan.out_dtype == jnp.dtype(jnp.float32)

    flops = 2 * plan.M * plan.N * plan.K
    # Actual HBM traffic including panel re-reads.
    bytes_accessed = ((plan.N // plan.tn) * plan.M * plan.K * cb
                      + (plan.M // plan.tm) * plan.K * plan.N * cb
                      + plan.M * plan.N * ob + plan.N * 4)
    cost = pl.CostEstimate(flops=flops, transcendentals=0,
                           bytes_accessed=bytes_accessed)

    # Optional deeper buffering of the streamed weight panel (v5e, exposed DMA).
    w_kwargs = ({} if plan.w_buffers <= 2
                else {"pipeline_mode": pl.Buffered(plan.w_buffers)})

    if k_steps == 1:
        grid = (plan.M // plan.tm, plan.N // plan.tn)
        grid_spec = pltpu.PrefetchScalarGridSpec(
            num_scalar_prefetch=0,
            grid=grid,
            in_specs=[
                pl.BlockSpec((plan.tm, plan.K), lambda i, j: (i, 0)),
                pl.BlockSpec((plan.K, plan.tn), lambda i, j: (0, j), **w_kwargs),
                pl.BlockSpec((1, plan.tn), lambda i, j: (0, j)),
            ],
            out_specs=pl.BlockSpec((plan.tm, plan.tn), lambda i, j: (i, j)),
        )
        kernel = _linear_kernel_single_k
        semantics = ("parallel", "parallel")
    else:
        grid = (plan.M // plan.tm, plan.N // plan.tn, k_steps)
        scratch = [] if f32_out else [pltpu.VMEM((plan.tm, plan.tn), jnp.float32)]
        grid_spec = pltpu.PrefetchScalarGridSpec(
            num_scalar_prefetch=0,
            grid=grid,
            in_specs=[
                pl.BlockSpec((plan.tm, plan.tk), lambda i, j, k: (i, k)),
                pl.BlockSpec((plan.tk, plan.tn), lambda i, j, k: (k, j), **w_kwargs),
                pl.BlockSpec((1, plan.tn), lambda i, j, k: (0, j)),
            ],
            out_specs=pl.BlockSpec((plan.tm, plan.tn), lambda i, j, k: (i, j)),
            scratch_shapes=scratch,
        )
        kernel = _linear_kernel_multi_k_f32out if f32_out else _linear_kernel_multi_k_acc
        semantics = ("parallel", "parallel", "arbitrary")

    y = pl.pallas_call(
        kernel,
        out_shape=jax.ShapeDtypeStruct((plan.M, plan.N), plan.out_dtype),
        grid_spec=grid_spec,
        compiler_params=pltpu.CompilerParams(
            dimension_semantics=semantics,
            vmem_limit_bytes=plan.vmem_limit),
        cost_estimate=cost,
    )(xp, wp, bp)

    if (plan.M, plan.N) != (batch, plan.out_size):
        y = y[:batch, :plan.out_size]
    return y


# ----------------------------- params init ----------------------------------


def init_params(key, input_size: int, output_size: int):
    """Deterministic torch.nn.Linear-style init (kaiming-uniform-ish)."""
    kw_, kb_ = jax.random.split(key)
    bound = 1.0 / math.sqrt(input_size)
    # torch stores weight as (out, in); we keep it transposed (in, out) so the
    # kernel computes x @ w directly.
    w = jax.random.uniform(kw_, (input_size, output_size), jnp.float32,
                           minval=-bound, maxval=bound)
    b = jax.random.uniform(kb_, (output_size,), jnp.float32,
                           minval=-bound, maxval=bound)
    return w, b


if __name__ == "__main__":
    key = jax.random.PRNGKey(0)
    k_x, k_p = jax.random.split(key)

    # Small, module-consistent shapes (input_size=300 params -> output_size=130).
    batch, input_size, output_size = 24, 300, 130
    x = jax.random.normal(k_x, (batch, input_size), jnp.float32)
    w, b = init_params(k_p, input_size, output_size)
    y_ref = x @ w + b[None, :]

    # 1) Default plan: the whole K reduction fits -> single-step grid, no scratch.
    plan1 = plan_linear(batch, input_size, output_size, x_dtype=x.dtype)
    wp1, bp1 = prepare_linear_params(plan1, w, b)   # weights cast/padded once
    y1 = nn_pattern_forward(plan1, x, wp1, bp1)
    jax.block_until_ready(y1)
    assert y1.shape == (batch, output_size)
    assert bool(jnp.allclose(y1, y_ref, atol=5e-2, rtol=5e-2))

    # 2) Forced multi-step K, f32 output: accumulate directly in the output block.
    plan2 = plan_linear(batch, input_size, output_size, x_dtype=x.dtype,
                        max_tk=128)
    wp2, bp2 = prepare_linear_params(plan2, w, b)
    y2 = nn_pattern_forward(plan2, x, wp2, bp2)
    jax.block_until_ready(y2)
    assert bool(jnp.allclose(y2, y_ref, atol=5e-2, rtol=5e-2))

    # 3) Forced multi-step K, bf16 output: f32 VMEM scratch accumulator path.
    xb = x.astype(jnp.bfloat16)
    plan3 = plan_linear(batch, input_size, output_size, x_dtype=jnp.bfloat16,
                        max_tk=128)
    wp3, bp3 = prepare_linear_params(plan3, w, b)
    y3 = nn_pattern_forward(plan3, xb, wp3, bp3)
    jax.block_until_ready(y3)
    assert y3.dtype == jnp.bfloat16
    assert bool(jnp.allclose(y3.astype(jnp.float32), y_ref, atol=1e-1, rtol=1e-1))

    print("KERNEL_OK")
</pallas_src>

<mosaic_0001>
module attributes {stable_mosaic.version = 11 : i64} {
  func.func @_linear_kernel_single_k(%arg0: i32, %arg1: i32, %arg2: memref<32x384xbf16, #tpu.memory_space<vmem>>, %arg3: memref<384x128xbf16, #tpu.memory_space<vmem>>, %arg4: memref<1x128xf32, #tpu.memory_space<vmem>>, %arg5: memref<32x128xf32, #tpu.memory_space<vmem>>) attributes {dimension_semantics = [#tpu.dimension_semantics<parallel>, #tpu.dimension_semantics<parallel>], iteration_bounds = array<i64: 1, 2>, scalar_prefetch = 0 : i64, scratch_operands = 0 : i64, tpu.core_type = #tpu.core_type<tc>, window_params = [{transform_indices = @transform_0, window_bounds = array<i64: 32, 384>}, {transform_indices = @transform_1, window_bounds = array<i64: 384, 128>}, {transform_indices = @transform_2, window_bounds = array<i64: 1, 128>}, {transform_indices = @transform_3, window_bounds = array<i64: 32, 128>}]} {
    %c0 = arith.constant 0 : index
    %c0_0 = arith.constant 0 : index
    %0 = vector.load %arg2[%c0, %c0_0] : memref<32x384xbf16, #tpu.memory_space<vmem>>, vector<32x384xbf16>
    %c0_1 = arith.constant 0 : index
    %c0_2 = arith.constant 0 : index
    %1 = vector.load %arg3[%c0_1, %c0_2] : memref<384x128xbf16, #tpu.memory_space<vmem>>, vector<384x128xbf16>
    %cst = arith.constant dense<0.000000e+00> : vector<32x128xf32>
    %2 = tpu.matmul %0, %1, %cst {dimension_numbers = #tpu.dot_dimension_numbers<[1], [0], [0], [1], [0, 0, 1, 1], [], []>} : vector<32x384xbf16>, vector<384x128xbf16>, vector<32x128xf32> -> vector<32x128xf32>
    %c0_3 = arith.constant 0 : index
    %c0_4 = arith.constant 0 : index
    %3 = vector.load %arg4[%c0_3, %c0_4] : memref<1x128xf32, #tpu.memory_space<vmem>>, vector<1x128xf32>
    %4 = vector.broadcast %3 : vector<1x128xf32> to vector<32x128xf32>
    %5 = arith.addf %2, %4 : vector<32x128xf32>
    %c0_5 = arith.constant 0 : index
    %c0_6 = arith.constant 0 : index
    %6 = vector.load %arg5[%c0_5, %c0_6] : memref<32x128xf32, #tpu.memory_space<vmem>>, vector<32x128xf32>
    tpu.vector_store %arg5[%c0_5, %c0_6], %5 {strides = array<i32>} : memref<32x128xf32, #tpu.memory_space<vmem>>, vector<32x128xf32>,
    return
  }
  func.func @transform_0(%arg0: i32, %arg1: i32) -> (i32, i32) {
    %c0_i32 = arith.constant 0 : i32
    %c0_i32_0 = arith.constant 0 : i32
    return %arg0, %c0_i32 : i32, i32
  }
  func.func @transform_1(%arg0: i32, %arg1: i32) -> (i32, i32) {
    %c0_i32 = arith.constant 0 : i32
    %c0_i32_0 = arith.constant 0 : i32
    return %c0_i32, %arg1 : i32, i32
  }
  func.func @transform_2(%arg0: i32, %arg1: i32) -> (i32, i32) {
    %c0_i32 = arith.constant 0 : i32
    %c0_i32_0 = arith.constant 0 : i32
    return %c0_i32, %arg1 : i32, i32
  }
  func.func @transform_3(%arg0: i32, %arg1: i32) -> (i32, i32) {
    %c0_i32 = arith.constant 0 : i32
    return %arg0, %arg1 : i32, i32
  }
}

</mosaic_0001>

<llo_original>
// kernel: nn_pattern_forward.1
$region0: #{nn_pattern_forward.1}
  #allocation0 [shape = 'u32[]', space=smem, size = 0x4, offset = 0x4, fixed_abs, tag = 'smem constant byte address 0x4 - core index']
  #allocation1 [shape = 'u32[144,128]{1,0:T(1,128)}', space=vmem, size = 0x12000, scoped, tag = 'internal scratch']
  %s0 = inlined_call_operand.vmem [shape: bf16[32,384], index: 0, kind: input, shape index: {}]
  %s1 = inlined_call_operand.hbm [shape: bf16[384,256], index: 1, kind: input, shape index: {}]
  %s2 = inlined_call_operand.vmem [shape: f32[1,256], index: 2, kind: input, shape index: {}]
  %s3 = inlined_call_operand.vmem [shape: f32[32,256], index: 3, kind: output, shape index: {}]
  %s4 = sld [smem:[#allocation0]]
  $region83: #{nn_pattern_forward.1} parent=0
    _
  %s6 = ssub.s32 1, %s4
  %s7 = scalar_select 0, %s6, %s4
  $region1: #{nn_pattern_forward.1} parent=0
    #allocation2 [shape = 'u8[196608]{0}', space=vmem, size = 0x30000, scoped, tag = 'input window, operand 1']
    #allocation3 [shape = 's32[2]{0}', space=sflag, size = 0x8, scoped, tag = 'scoped memory for nn_pattern_forward.1']
    #allocation4 [shape = 'u8[32768]{0}', space=vmem, size = 0x8000, scoped, tag = 'output window, operand 0']
    %8 = vsyncpa [#allocation3], 0
    %s9 = scalar_lea.sflag [#allocation3], 1
    %10 = vsyncpa %s9, 0
    loop: start=0, step=1, limit=4
    $region2: #{nn_pattern_forward.1} parent=1 // loop_pre_header
      _
    $region3: #{nn_pattern_forward.1} parent=1 // loop_header
      %s12 = sphi 0, %s16
      %p13 = scmp.ge.s32.totalorder %s12, 4
      %s19 = sphi 0, %s31
      %s20 = sphi 0, %s27
      %s21 = sphi 0, %s19
      %s22 = sphi 0, %s20
      %s23 = sphi 0, %s21
      %s24 = sphi 0, %s22
      %s34 = sphi 0, %s36
      %s37 = sphi 0, %s34
      %s38 = sphi 0, %s37
      %s54 = sphi 0, %s38
      %s60 = sphi 0, %s62
      %s63 = sphi 0, %s60
      %s64 = sphi 0, %s63
      %s80 = sphi 0, %s64
      %s86 = sphi 0, %s88
      %s89 = sphi 0, %s86
      %s90 = sphi 0, %s89
      %s106 = sphi 0, %s90
      %s114 = sphi 0, %s116
      %s117 = sphi 0, %s114
      %s118 = sphi 0, %s117
      %s134 = sphi 0, %s118
    $region4: #{nn_pattern_forward.1} parent=1 // loop_header_branch
      %15 = sbr.rel (%p13) target = $region8
    $region5: #{nn_pattern_forward.1} parent=1 // loop_body
      %s17 = ssub.s32 %s12, 1
      %s18 = ssub.s32 %s12, 2
      %s25 = sadd.s32 1, %s20
      %p26 = scmp.ge.s32.totalorder %s25, 2
      %s27 = scalar_select %p26, 0, %s25
      %s28 = sadd.s32 1, %s19
      %s29 = scalar_select %p26, %s28, %s19
      %p30 = scmp.ge.s32.totalorder %s29, 1
      %s31 = scalar_select %p30, 0, %s29
      %s32 = ssub.s32 %s19, %s31
      %p33 = scmp.eq.s32.totalorder %s32, 0
      %s35 = sadd.s32 %s34, 1
      %s36 = scalar_select %p33, %s34, %s35
      %p39 = pneg %p33
      %p40 = scmp.eq.s32.totalorder %s12, 1
      %p41 = por %p39, %p40
      %p42 = scmp.ne.s32.totalorder %s34, %s37
      %p43 = scmp.eq.s32.totalorder %s12, 0
      %p44 = por %p42, %p43
      %p45 = scmp.ne.s32.totalorder %s34, %s37
      %p46 = scmp.eq.s32.totalorder %s17, 1
      %p47 = por %p45, %p46
      %p48 = scmp.ne.s32.totalorder %s37, %s38
      %p49 = scmp.eq.s32.totalorder %s17, 0
      %p50 = por %p48, %p49
      %p51 = scmp.ne.s32.totalorder %s37, %s38
      %p52 = scmp.eq.s32.totalorder %s18, 1
      %p53 = por %p51, %p52
      %p55 = scmp.ne.s32.totalorder %s38, %s54
      %p56 = scmp.eq.s32.totalorder %s18, 0
      %p57 = por %p55, %p56
      %s58 = ssub.s32 %s20, %s27
      %p59 = scmp.eq.s32.totalorder %s58, 0
      %s61 = sadd.s32 %s60, 1
      %s62 = scalar_select %p59, %s60, %s61
      %p65 = pneg %p59
      %p66 = scmp.eq.s32.totalorder %s12, 1
      %p67 = por %p65, %p66
      %p68 = scmp.ne.s32.totalorder %s60, %s63
      %p69 = scmp.eq.s32.totalorder %s12, 0
      %p70 = por %p68, %p69
      %p71 = scmp.ne.s32.totalorder %s60, %s63
      %p72 = scmp.eq.s32.totalorder %s17, 1
      %p73 = por %p71, %p72
      %p74 = scmp.ne.s32.totalorder %s63, %s64
      %p75 = scmp.eq.s32.totalorder %s17, 0
      %p76 = por %p74, %p75
      %p77 = scmp.ne.s32.totalorder %s63, %s64
      %p78 = scmp.eq.s32.totalorder %s18, 1
      %p79 = por %p77, %p78
      %p81 = scmp.ne.s32.totalorder %s64, %s80
      %p82 = scmp.eq.s32.totalorder %s18, 0
      %p83 = por %p81, %p82
      %s84 = ssub.s32 %s20, %s27
      %p85 = scmp.eq.s32.totalorder %s84, 0
      %s87 = sadd.s32 %s86, 1
      %s88 = scalar_select %p85, %s86, %s87
      %p91 = pneg %p85
      %p92 = scmp.eq.s32.totalorder %s12, 1
      %p93 = por %p91, %p92
      %p94 = scmp.ne.s32.totalorder %s86, %s89
      %p95 = scmp.eq.s32.totalorder %s12, 0
      %p96 = por %p94, %p95
      %p97 = scmp.ne.s32.totalorder %s86, %s89
      %p98 = scmp.eq.s32.totalorder %s17, 1
      %p99 = por %p97, %p98
      %p100 = scmp.ne.s32.totalorder %s89, %s90
      %p101 = scmp.eq.s32.totalorder %s17, 0
      %p102 = por %p100, %p101
      %p103 = scmp.ne.s32.totalorder %s89, %s90
      %p104 = scmp.eq.s32.totalorder %s18, 1
      %p105 = por %p103, %p104
      %p107 = scmp.ne.s32.totalorder %s90, %s106
      %p108 = scmp.eq.s32.totalorder %s18, 0
      %p109 = por %p107, %p108
      %s110 = ssub.s32 %s19, %s31
      %s111 = ssub.s32 %s20, %s27
      %s112 = sor.u32 %s110, %s111
      %p113 = scmp.eq.s32.totalorder %s112, 0
      %s115 = sadd.s32 %s114, 1
      %s116 = scalar_select %p113, %s114, %s115
      %p119 = pneg %p113
      %p120 = scmp.eq.s32.totalorder %s12, 1
      %p121 = por %p119, %p120
      %p122 = scmp.ne.s32.totalorder %s114, %s117
      %p123 = scmp.eq.s32.totalorder %s12, 0
      %p124 = por %p122, %p123
      %p125 = scmp.ne.s32.totalorder %s114, %s117
      %p126 = scmp.eq.s32.totalorder %s17, 1
      %p127 = por %p125, %p126
      %p128 = scmp.ne.s32.totalorder %s117, %s118
      %p129 = scmp.eq.s32.totalorder %s17, 0
      %p130 = por %p128, %p129
      %p131 = scmp.ne.s32.totalorder %s117, %s118
      %p132 = scmp.eq.s32.totalorder %s18, 1
      %p133 = por %p131, %p132
      %p135 = scmp.ne.s32.totalorder %s118, %s134
      %p136 = scmp.eq.s32.totalorder %s18, 0
      %p137 = por %p135, %p136
      %p138 = scmp.le.s32.totalorder 1, %s12
      %p139 = scmp.lt.s32.totalorder %s12, 3
      %p140 = pnand %p138, %p139
      %p141 = pneg %p140
      // Predicated region
      $region9: #{nn_pattern_forward.1} parent=5 // pred_check
        _
      $region10: #{nn_pattern_forward.1} parent=5 // pred_check_branch
        %143 = sbr.rel (%p140) target = $region12
      $region11: #{nn_pattern_forward.1} parent=5 // pred_region
        %s144 = ssub.s32 %s12, 1
        // Predicated region
        $region13: #{nn_pattern_forward.1} parent=11 // pred_check
          %p145 = pneg %p50
        $region14: #{nn_pattern_forward.1} parent=11 // pred_check_branch
          %147 = sbr.rel (%p145) target = $region16
        $region15: #{nn_pattern_forward.1} parent=11 // pred_region
          %s148 = smul.u32 4, %s21
          %p149 = scmp.lt.s32.totalorder %s148, 3
          %s150 = scalar_select %p149, %s148, 3
          %s151 = smul.addr %s150, 3
          %s152 = smul.addr %s151, 4
          %s153 = scalar_lea.vmem %s0, %s152
          %s154 = smul.u32 4, %s21
        $region16: #{nn_pattern_forward.1} parent=11 // pred_fallthru
          _
      $region12: #{nn_pattern_forward.1} parent=5 // pred_fallthru
        _
      %p155 = scmp.lt.s32.totalorder %s12, 2
      // Predicated region
      $region17: #{nn_pattern_forward.1} parent=5 // pred_check
        %p156 = pneg %p155
      $region18: #{nn_pattern_forward.1} parent=5 // pred_check_branch
        %158 = sbr.rel (%p156) target = $region20
      $region19: #{nn_pattern_forward.1} parent=5 // pred_region
        // Predicated region
        $region21: #{nn_pattern_forward.1} parent=19 // pred_check
          %p159 = pneg %p70
        $region22: #{nn_pattern_forward.1} parent=19 // pred_check_branch
          %161 = sbr.rel (%p159) target = $region24
        $region23: #{nn_pattern_forward.1} parent=19 // pred_region
          %s162 = sand.u32 %s60, 1
          %s163 = scalar_lea.sflag [#allocation3], %s162
          %s164 = sand.u32 %s60, 1
          %s165 = smul.addr %s164, 192
          %s166 = scalar_lea.vmem [#allocation2], %s165
          %s168 = ssub.s32 3072, 3072
          %169 = vsyncadd %s163, %s168
          %s170 = smul.addr %s20, 64
          %s171 = scalar_lea.hbm %s1, %s170
          %s172 = sshll.u32 %s166, 4
          %s173 = int_to_ptr.vmem [resolvable:$true] %s172
          %178 = dma.hbm_to_vmem [thread:$0]  %s171, 3072, %s173, %s163, 128, 64, 4
        $region24: #{nn_pattern_forward.1} parent=19 // pred_fallthru
          _
        // Predicated region
        $region25: #{nn_pattern_forward.1} parent=19 // pred_check
          %p179 = pneg %p96
        $region26: #{nn_pattern_forward.1} parent=19 // pred_check_branch
          %181 = sbr.rel (%p179) target = $region28
        $region27: #{nn_pattern_forward.1} parent=19 // pred_region
          %p182 = scmp.lt.s32.totalorder %s20, 1
          %s183 = scalar_select %p182, %s20, 1
          %s184 = scalar_lea.vmem %s2, %s183
        $region28: #{nn_pattern_forward.1} parent=19 // pred_fallthru
          _
      $region20: #{nn_pattern_forward.1} parent=5 // pred_fallthru
        _
      %p185 = scmp.le.s32.totalorder 1, %s12
      %p186 = scmp.lt.s32.totalorder %s12, 3
      %p187 = pnand %p185, %p186
      %p188 = pneg %p187
      // Predicated region
      $region29: #{nn_pattern_forward.1} parent=5 // pred_check
        _
      $region30: #{nn_pattern_forward.1} parent=5 // pred_check_branch
        %190 = sbr.rel (%p187) target = $region32
      $region31: #{nn_pattern_forward.1} parent=5 // pred_region
        %s191 = ssub.s32 %s12, 1
        %s192 = sand.u32 %s63, 1
        %s193 = scalar_lea.sflag [#allocation3], %s192
        %s194 = sand.u32 %s63, 1
        %s195 = smul.addr %s194, 192
        %s196 = scalar_lea.vmem [#allocation2], %s195
        // Predicated region
        $region33: #{nn_pattern_forward.1} parent=31 // pred_check
          %p197 = pneg %p76
        $region34: #{nn_pattern_forward.1} parent=31 // pred_check_branch
          %199 = sbr.rel (%p197) target = $region36
        $region35: #{nn_pattern_forward.1} parent=31 // pred_region
          %200 = dma.done %s193, 3072
        $region36: #{nn_pattern_forward.1} parent=31 // pred_fallthru
          _
        %s201 = smul.u32 4, %s21
        %p202 = scmp.lt.s32.totalorder %s201, 3
        %s203 = scalar_select %p202, %s201, 3
        %s204 = smul.addr %s203, 3
        %s205 = smul.addr %s204, 4
        %s206 = scalar_lea.vmem %s0, %s205
        %p207 = pneg %p50
        %p208 = pneg %p47
        %s209 = sand.u32 %s63, 1
        %s210 = scalar_lea.sflag [#allocation3], %s209
        %s211 = sand.u32 %s63, 1
        %s212 = smul.addr %s211, 192
        %s213 = scalar_lea.vmem [#allocation2], %s212
        %p214 = pneg %p76
        %p215 = pneg %p73
        %p216 = scmp.lt.s32.totalorder %s22, 1
        %s217 = scalar_select %p216, %s22, 1
        %s218 = scalar_lea.vmem %s2, %s217
        %p219 = pneg %p102
        %p220 = pneg %p99
        %p221 = pneg %p130
        %p222 = pneg %p127
        %s223 = sand.u32 %s117, 1
        %s224 = sand.u32 %s117, 1
        %s225 = smul.addr %s224, 32
        %s226 = scalar_lea.vmem [#allocation4], %s225
        %s227 = smul.u32 4, %s21
        %p228 = scmp.lt.s32.totalorder %s227, 3
        %s229 = scalar_select %p228, %s227, 3
        %s230 = smul.addr %s229, 3
        %s231 = smul.addr %s230, 4
        %s232 = scalar_lea.vmem %s0, %s231
        %s233 = smul.u32 4, %s21
        %p234 = scmp.lt.s32.totalorder %s22, 1
        %s235 = scalar_select %p234, %s22, 1
        %s236 = scalar_lea.vmem %s2, %s235
        %s237 = smul.u32 4, %s21
        %v239 = vld [vmem:[%s232] sm:$0xff]
        %v240 = vld [vmem:[%s232 + $0x8] sm:$0xf]
        %v241 = vld [vmem:[%s232 + $0xc] sm:$0xff]
        %v242 = vld [vmem:[%s232 + $0x14] sm:$0xf]
        %v243 = vld [vmem:[%s232 + $0x18] sm:$0xff]
        %v244 = vld [vmem:[%s232 + $0x20] sm:$0xf]
        %v245 = vld [vmem:[%s232 + $0x24] sm:$0xff]
        %v246 = vld [vmem:[%s232 + $0x2c] sm:$0xf]
        %v247 = vld [vmem:[%s196] sm:$0xf]
        %v248 = vld [vmem:[%s196 + $0x4] sm:$0xf]
        %v249 = vld [vmem:[%s196 + $0x8] sm:$0xf]
        %v250 = vld [vmem:[%s196 + $0xc] sm:$0xf]
        %v251 = vld [vmem:[%s196 + $0x10] sm:$0xf]
        %v252 = vld [vmem:[%s196 + $0x14] sm:$0xf]
        %v253 = vld [vmem:[%s196 + $0x18] sm:$0xf]
        %v254 = vld [vmem:[%s196 + $0x1c] sm:$0xf]
        %v255 = vld [vmem:[%s196 + $0x20] sm:$0xf]
        %v256 = vld [vmem:[%s196 + $0x24] sm:$0xf]
        %v257 = vld [vmem:[%s196 + $0x28] sm:$0xf]
        %v258 = vld [vmem:[%s196 + $0x2c] sm:$0xf]
        %v259 = vld [vmem:[%s196 + $0x30] sm:$0xf]
        %v260 = vld [vmem:[%s196 + $0x34] sm:$0xf]
        %v261 = vld [vmem:[%s196 + $0x38] sm:$0xf]
        %v262 = vld [vmem:[%s196 + $0x3c] sm:$0xf]
        %v263 = vld [vmem:[%s196 + $0x40] sm:$0xf]
        %v264 = vld [vmem:[%s196 + $0x44] sm:$0xf]
        %v265 = vld [vmem:[%s196 + $0x48] sm:$0xf]
        %v266 = vld [vmem:[%s196 + $0x4c] sm:$0xf]
        %v267 = vld [vmem:[%s196 + $0x50] sm:$0xf]
        %v268 = vld [vmem:[%s196 + $0x54] sm:$0xf]
        %v269 = vld [vmem:[%s196 + $0x58] sm:$0xf]
        %v270 = vld [vmem:[%s196 + $0x5c] sm:$0xf]
        %v271 = vld [vmem:[%s196 + $0x60] sm:$0xf]
        %v272 = vld [vmem:[%s196 + $0x64] sm:$0xf]
        %v273 = vld [vmem:[%s196 + $0x68] sm:$0xf]
        %v274 = vld [vmem:[%s196 + $0x6c] sm:$0xf]
        %v275 = vld [vmem:[%s196 + $0x70] sm:$0xf]
        %v276 = vld [vmem:[%s196 + $0x74] sm:$0xf]
        %v277 = vld [vmem:[%s196 + $0x78] sm:$0xf]
        %v278 = vld [vmem:[%s196 + $0x7c] sm:$0xf]
        %v279 = vld [vmem:[%s196 + $0x80] sm:$0xf]
        %v280 = vld [vmem:[%s196 + $0x84] sm:$0xf]
        %v281 = vld [vmem:[%s196 + $0x88] sm:$0xf]
        %v282 = vld [vmem:[%s196 + $0x8c] sm:$0xf]
        %v283 = vld [vmem:[%s196 + $0x90] sm:$0xf]
        %v284 = vld [vmem:[%s196 + $0x94] sm:$0xf]
        %v285 = vld [vmem:[%s196 + $0x98] sm:$0xf]
        %v286 = vld [vmem:[%s196 + $0x9c] sm:$0xf]
        %v287 = vld [vmem:[%s196 + $0xa0] sm:$0xf]
        %v288 = vld [vmem:[%s196 + $0xa4] sm:$0xf]
        %v289 = vld [vmem:[%s196 + $0xa8] sm:$0xf]
        %v290 = vld [vmem:[%s196 + $0xac] sm:$0xf]
        %v291 = vld [vmem:[%s196 + $0xb0] sm:$0xf]
        %v292 = vld [vmem:[%s196 + $0xb4] sm:$0xf]
        %v293 = vld [vmem:[%s196 + $0xb8] sm:$0xf]
        %v294 = vld [vmem:[%s196 + $0xbc] sm:$0xf]
        %v295 = vld [vmem:[%s236] sm:$0x1]
        %v297 = vlaneseq
        %v298 = vshrl.u32 %v297, 7
        %v299 = vsub.s32 0, %v298
        %v300 = vrot.slane %v295, %v299
        %v310 = vunpack.c.l.b16 %v239
        %v311 = vunpack.c.h.b16 %v239
        %v312 = vunpack.c.l.b16 %v240
        %v313 = vunpack.c.l.b16 %v241
        %v314 = vunpack.c.h.b16 %v241
        %v315 = vunpack.c.l.b16 %v242
        %v316 = vunpack.c.l.b16 %v243
        %v317 = vunpack.c.h.b16 %v243
        %v318 = vunpack.c.l.b16 %v244
        %v319 = vunpack.c.l.b16 %v245
        %v320 = vunpack.c.h.b16 %v245
        %v321 = vunpack.c.l.b16 %v246
        %v322 = vpack.c.b16 %v313, %v310
        %v323 = vpack.c.b16 %v314, %v311
        %v324 = vpack.c.b16 %v315, %v312
        %v325 = vpack.c.b16 %v319, %v316
        %v326 = vpack.c.b16 %v320, %v317
        %v327 = vpack.c.b16 %v321, %v318
        %v382 = vunpack.c.l.b16 %v247
        %v383 = vunpack.c.l.b16 %v248
        %v384 = vunpack.c.l.b16 %v249
        %v385 = vunpack.c.l.b16 %v250
        %v386 = vunpack.c.l.b16 %v251
        %v387 = vunpack.c.l.b16 %v252
        %v388 = vunpack.c.l.b16 %v253
        %v389 = vunpack.c.l.b16 %v254
        %v390 = vunpack.c.l.b16 %v255
        %v391 = vunpack.c.l.b16 %v256
        %v392 = vunpack.c.l.b16 %v257
        %v393 = vunpack.c.l.b16 %v258
        %v394 = vunpack.c.l.b16 %v259
        %v395 = vunpack.c.l.b16 %v260
        %v396 = vunpack.c.l.b16 %v261
        %v397 = vunpack.c.l.b16 %v262
        %v398 = vunpack.c.l.b16 %v263
        %v399 = vunpack.c.l.b16 %v264
        %v400 = vunpack.c.l.b16 %v265
        %v401 = vunpack.c.l.b16 %v266
        %v402 = vunpack.c.l.b16 %v267
        %v403 = vunpack.c.l.b16 %v268
        %v404 = vunpack.c.l.b16 %v269
        %v405 = vunpack.c.l.b16 %v270
        %v406 = vunpack.c.l.b16 %v271
        %v407 = vunpack.c.l.b16 %v272
        %v408 = vunpack.c.l.b16 %v273
        %v409 = vunpack.c.l.b16 %v274
        %v410 = vunpack.c.l.b16 %v275
        %v411 = vunpack.c.l.b16 %v276
        %v412 = vunpack.c.l.b16 %v277
        %v413 = vunpack.c.l.b16 %v278
        %v414 = vunpack.c.l.b16 %v279
        %v415 = vunpack.c.l.b16 %v280
        %v416 = vunpack.c.l.b16 %v281
        %v417 = vunpack.c.l.b16 %v282
        %v418 = vunpack.c.l.b16 %v283
        %v419 = vunpack.c.l.b16 %v284
        %v420 = vunpack.c.l.b16 %v285
        %v421 = vunpack.c.l.b16 %v286
        %v422 = vunpack.c.l.b16 %v287
        %v423 = vunpack.c.l.b16 %v288
        %v424 = vunpack.c.l.b16 %v289
        %v425 = vunpack.c.l.b16 %v290
        %v426 = vunpack.c.l.b16 %v291
        %v427 = vunpack.c.l.b16 %v292
        %v428 = vunpack.c.l.b16 %v293
        %v429 = vunpack.c.l.b16 %v294
        %v430 = vpack.c.b16 %v383, %v382
        %v431 = vpack.c.b16 %v385, %v384
        %v432 = vpack.c.b16 %v387, %v386
        %v433 = vpack.c.b16 %v389, %v388
        %v434 = vpack.c.b16 %v391, %v390
        %v435 = vpack.c.b16 %v393, %v392
        %v436 = vpack.c.b16 %v395, %v394
        %v437 = vpack.c.b16 %v397, %v396
        %v438 = vpack.c.b16 %v399, %v398
        %v439 = vpack.c.b16 %v401, %v400
        %v440 = vpack.c.b16 %v403, %v402
        %v441 = vpack.c.b16 %v405, %v404
        %v442 = vpack.c.b16 %v407, %v406
        %v443 = vpack.c.b16 %v409, %v408
        %v444 = vpack.c.b16 %v411, %v410
        %v445 = vpack.c.b16 %v413, %v412
        %v446 = vpack.c.b16 %v415, %v414
        %v447 = vpack.c.b16 %v417, %v416
        %v448 = vpack.c.b16 %v419, %v418
        %v449 = vpack.c.b16 %v421, %v420
        %v450 = vpack.c.b16 %v423, %v422
        %v451 = vpack.c.b16 %v425, %v424
        %v452 = vpack.c.b16 %v427, %v426
        %v453 = vpack.c.b16 %v429, %v428
        %478 = vmatprep.subr.bf16.mxu0 0
        %479 = vmatpush1.bf16.msra.mxu0 %v437
        %480 = vmatprep.subr.bf16.mxu0 0
        %481 = vmatpush1.bf16.msra.mxu0 %v436
        %482 = vmatprep.subr.bf16.mxu0 0
        %483 = vmatpush1.bf16.msra.mxu0 %v435
        %484 = vmatprep.subr.bf16.mxu0 0
        %485 = vmatpush1.bf16.msra.mxu0 %v434
        %486 = vmatprep.subr.bf16.mxu0 0
        %487 = vmatpush1.bf16.msra.mxu0 %v433
        %488 = vmatprep.subr.bf16.mxu0 0
        %489 = vmatpush1.bf16.msra.mxu0 %v432
        %490 = vmatprep.subr.bf16.mxu0 0
        %491 = vmatpush1.bf16.msra.mxu0 %v431
        %492 = vmatprep.subr.bf16.mxu0 0
        %493 = vmatpush1.bf16.msra.mxu0 %v430
        %494 = vmatprep.subr.bf16.mxu0 0
        %495 = vmatpush2.bf16.msra.mxu0 %v445
        %496 = vmatprep.subr.bf16.mxu0 0
        %497 = vmatpush2.bf16.msra.mxu0 %v444
        %498 = vmatprep.subr.bf16.mxu0 0
        %499 = vmatpush2.bf16.msra.mxu0 %v443
        %500 = vmatprep.subr.bf16.mxu0 0
        %501 = vmatpush2.bf16.msra.mxu0 %v442
        %502 = vmatprep.subr.bf16.mxu0 0
        %503 = vmatpush2.bf16.msra.mxu0 %v441
        %504 = vmatprep.subr.bf16.mxu0 0
        %505 = vmatpush2.bf16.msra.mxu0 %v440
        %506 = vmatprep.subr.bf16.mxu0 0
        %507 = vmatpush2.bf16.msra.mxu0 %v439
        %508 = vmatprep.subr.bf16.mxu0 0
        %509 = vmatpush2.bf16.msra.mxu0 %v438
        %510 = vmatprep.mubr.bf16.mxu0 %v323
        %511 = vmatmul.mubr.bf16.gmra.mxu0 %v322
        %v512 = vpop.f32.mrf.mxu0
        %v513 = vadd.f32 %v300, %v512
        %v514 = vpop.f32.mrf.mxu0
        %v515 = vpop.f32.mrf.mxu0
        %v516 = vadd.f32 %v300, %v515
        %v517 = vpop.f32.mrf.mxu0
        %518 = vmatprep.mubr.bf16.mxu0 %v326
        %519 = vmatmul.mubr.bf16.gmra.mxu0 %v325
        %v520 = vpop.f32.mrf.mxu0
        %v521 = vadd.f32 %v300, %v520
        %v522 = vpop.f32.mrf.mxu0
        %v523 = vpop.f32.mrf.mxu0
        %v524 = vadd.f32 %v300, %v523
        %v525 = vpop.f32.mrf.mxu0
        %526 = vdwg.mxu0
        %527 = vmatprep.subr.bf16.mxu0 0
        %528 = vmatpush1.bf16.msra.mxu0 %v453
        %529 = vmatprep.subr.bf16.mxu0 0
        %530 = vmatpush1.bf16.msra.mxu0 %v452
        %531 = vmatprep.subr.bf16.mxu0 0
        %532 = vmatpush1.bf16.msra.mxu0 %v451
        %533 = vmatprep.subr.bf16.mxu0 0
        %534 = vmatpush1.bf16.msra.mxu0 %v450
        %535 = vmatprep.subr.bf16.mxu0 0
        %536 = vmatpush1.bf16.msra.mxu0 %v449
        %537 = vmatprep.subr.bf16.mxu0 0
        %538 = vmatpush1.bf16.msra.mxu0 %v448
        %539 = vmatprep.subr.bf16.mxu0 0
        %540 = vmatpush1.bf16.msra.mxu0 %v447
        %541 = vmatprep.subr.bf16.mxu0 0
        %542 = vmatpush1.bf16.msra.mxu0 %v446
        %543 = vmatprep.subr.bf16.mxu0 0
        %544 = vmatpush2.bf16.msra.mxu0 0
        %545 = vmatprep.subr.bf16.mxu0 0
        %546 = vmatpush2.bf16.msra.mxu0 0
        %547 = vmatprep.subr.bf16.mxu0 0
        %548 = vmatpush2.bf16.msra.mxu0 0
        %549 = vmatprep.subr.bf16.mxu0 0
        %550 = vmatpush2.bf16.msra.mxu0 0
        %551 = vmatprep.subr.bf16.mxu0 0
        %552 = vmatpush2.bf16.msra.mxu0 0
        %553 = vmatprep.subr.bf16.mxu0 0
        %554 = vmatpush2.bf16.msra.mxu0 0
        %555 = vmatprep.subr.bf16.mxu0 0
        %556 = vmatpush2.bf16.msra.mxu0 0
        %557 = vmatprep.subr.bf16.mxu0 0
        %558 = vmatpush2.bf16.msra.mxu0 0
        %559 = vmatprep.mubr.bf16.mxu0 0
        %560 = vmatmul.mubr.bf16.gmra.mxu0 %v324
        %v561 = vpop.f32.mrf.mxu0
        %v562 = vadd.f32 %v513, %v561
        %v563 = vpop.f32.mrf.mxu0
        %v564 = vpop.f32.mrf.mxu0
        %v565 = vadd.f32 %v516, %v564
        %v566 = vpop.f32.mrf.mxu0
        %567 = vmatprep.mubr.bf16.mxu0 0
        %568 = vmatmul.mubr.bf16.gmra.mxu0 %v327
        %v569 = vpop.f32.mrf.mxu0
        %v570 = vadd.f32 %v521, %v569
        %v571 = vpop.f32.mrf.mxu0
        %v572 = vpop.f32.mrf.mxu0
        %v573 = vadd.f32 %v524, %v572
        %v574 = vpop.f32.mrf.mxu0
        %575 = vdwg.mxu0
        %576 = vst [vmem:[%s226] sm:$0xff] %v562
        %577 = vst [vmem:[%s226 + $0x8] sm:$0xff] %v565
        %578 = vst [vmem:[%s226 + $0x10] sm:$0xff] %v570
        %579 = vst [vmem:[%s226 + $0x18] sm:$0xff] %v573
        %s580 = sand.u32 %s117, 1
        %s581 = sand.u32 %s117, 1
        %s582 = smul.addr %s581, 32
        %s583 = scalar_lea.vmem [#allocation4], %s582
        // Predicated region
        $region37: #{nn_pattern_forward.1} parent=31 // pred_check
          %p584 = pneg %p127
        $region38: #{nn_pattern_forward.1} parent=31 // pred_check_branch
          %586 = sbr.rel (%p584) target = $region40
        $region39: #{nn_pattern_forward.1} parent=31 // pred_region
          %s587 = smul.u32 4, %s21
          %s588 = smul.addr %s587, 2
          %s589 = sadd.s32 %s22, %s588
          %s590 = smul.addr %s589, 8
          %s591 = scalar_lea.vmem %s3, %s590
          // Predicated region
          $region41: #{nn_pattern_forward.1} parent=39 // pred_check
            _
          $region42: #{nn_pattern_forward.1} parent=39 // pred_check_branch
            %593 = sbr.rel (0) target = $region44
          $region43: #{nn_pattern_forward.1} parent=39 // pred_region
            // Predicated region
            $region45: #{nn_pattern_forward.1} parent=43 // pred_check
              _
            $region46: #{nn_pattern_forward.1} parent=43 // pred_check_branch
              %595 = sbr.rel (0) target = $region48
            $region47: #{nn_pattern_forward.1} parent=43 // pred_region
              // Predicated region
              $region60: #{nn_pattern_forward.1} parent=47 // pred_check
                _
              $region61: #{nn_pattern_forward.1} parent=47 // pred_check_branch
                %617 = sbr.rel (0) target = $region63
              $region62: #{nn_pattern_forward.1} parent=47 // pred_region
                loop: start=0, step=1, limit=1
                $region64: #{nn_pattern_forward.1} parent=62 // loop_pre_header
                  _
                $region65: #{nn_pattern_forward.1} parent=62 // loop_header
                  %s619 = sphi 0, %s623
                  %p620 = scmp.ge.s32.totalorder %s619, 1
                  %s624 = sphi %s583, %s583
                  %s625 = sphi %s591, %s591
                $region66: #{nn_pattern_forward.1} parent=62 // loop_header_branch
                  %622 = sbr.rel (%p620) target = $region70
                $region67: #{nn_pattern_forward.1} parent=62 // loop_body
                  %v626 = vld [vmem:[%s624] sm:$0xff]
                  %627 = vst [vmem:[%s625] sm:$0xff] %v626
                  %v628 = vld [vmem:[%s624 + $0x8] sm:$0xff]
                  %629 = vst [vmem:[%s625 + $0x10] sm:$0xff] %v628
                  %v630 = vld [vmem:[%s624 + $0x10] sm:$0xff]
                  %631 = vst [vmem:[%s625 + $0x20] sm:$0xff] %v630
                  %v632 = vld [vmem:[%s624 + $0x18] sm:$0xff]
                  %633 = vst [vmem:[%s625 + $0x30] sm:$0xff] %v632
                $region68: #{nn_pattern_forward.1} parent=62 // loop_footer
                  %s623 = sadd.s32 1, %s619
                $region69: #{nn_pattern_forward.1} parent=62 // loop_footer_branch
                  %618 = sbr.rel target = $region65
                $region70: #{nn_pattern_forward.1} parent=62 // loop_exit
                  _
              $region63: #{nn_pattern_forward.1} parent=47 // pred_fallthru
                _
              // Predicated region
              $region71: #{nn_pattern_forward.1} parent=47 // pred_check
                _
              $region72: #{nn_pattern_forward.1} parent=47 // pred_check_branch
                %635 = sbr.rel target = $region74
              $region73: #{nn_pattern_forward.1} parent=47 // pred_region
                _
              $region74: #{nn_pattern_forward.1} parent=47 // pred_fallthru
                _
            $region48: #{nn_pattern_forward.1} parent=43 // pred_fallthru
              _
            // Predicated region
            $region49: #{nn_pattern_forward.1} parent=43 // pred_check
              _
            $region50: #{nn_pattern_forward.1} parent=43 // pred_check_branch
              %597 = sbr.rel target = $region52
            $region51: #{nn_pattern_forward.1} parent=43 // pred_region
              %s599 = ssub.s32 256, 1
              loop: start=0, step=1, limit=1
              $region53: #{nn_pattern_forward.1} parent=51 // loop_pre_header
                _
              $region54: #{nn_pattern_forward.1} parent=51 // loop_header
                %s601 = sphi 0, %s605
                %p602 = scmp.ge.s32.totalorder %s601, 1
                %s606 = sphi %s583, %s583
                %s607 = sphi %s591, %s591
              $region55: #{nn_pattern_forward.1} parent=51 // loop_header_branch
                %604 = sbr.rel (%p602) target = $region59
              $region56: #{nn_pattern_forward.1} parent=51 // loop_body
                %v608 = vld [vmem:[%s606] sm:%s599]
                %609 = vst [vmem:[%s607] sm:%s599] %v608
                %v610 = vld [vmem:[%s606 + $0x8] sm:%s599]
                %611 = vst [vmem:[%s607 + $0x10] sm:%s599] %v610
                %v612 = vld [vmem:[%s606 + $0x10] sm:%s599]
                %613 = vst [vmem:[%s607 + $0x20] sm:%s599] %v612
                %v614 = vld [vmem:[%s606 + $0x18] sm:%s599]
                %615 = vst [vmem:[%s607 + $0x30] sm:%s599] %v614
              $region57: #{nn_pattern_forward.1} parent=51 // loop_footer
                %s605 = sadd.s32 1, %s601
              $region58: #{nn_pattern_forward.1} parent=51 // loop_footer_branch
                %600 = sbr.rel target = $region54
              $region59: #{nn_pattern_forward.1} parent=51 // loop_exit
                _
            $region52: #{nn_pattern_forward.1} parent=43 // pred_fallthru
              _
          $region44: #{nn_pattern_forward.1} parent=39 // pred_fallthru
            _
          %636 = vnop
        $region40: #{nn_pattern_forward.1} parent=31 // pred_fallthru
          _
      $region32: #{nn_pattern_forward.1} parent=5 // pred_fallthru
        _
      %p637 = scmp.le.s32.totalorder 2, %s12
      // Predicated region
      $region75: #{nn_pattern_forward.1} parent=5 // pred_check
        %p638 = pneg %p637
      $region76: #{nn_pattern_forward.1} parent=5 // pred_check_branch
        %640 = sbr.rel (%p638) target = $region78
      $region77: #{nn_pattern_forward.1} parent=5 // pred_region
        %s641 = ssub.s32 %s12, 2
        // Predicated region
        $region79: #{nn_pattern_forward.1} parent=77 // pred_check
          %p642 = pneg %p133
        $region80: #{nn_pattern_forward.1} parent=77 // pred_check_branch
          %644 = sbr.rel (%p642) target = $region82
        $region81: #{nn_pattern_forward.1} parent=77 // pred_region
          %s645 = sand.u32 %s118, 1
          %s646 = sand.u32 %s118, 1
          %s647 = smul.addr %s646, 32
          %s648 = scalar_lea.vmem [#allocation4], %s647
        $region82: #{nn_pattern_forward.1} parent=77 // pred_fallthru
          _
      $region78: #{nn_pattern_forward.1} parent=5 // pred_fallthru
        _
    $region6: #{nn_pattern_forward.1} parent=1 // loop_footer
      %s16 = sadd.s32 1, %s12
    $region7: #{nn_pattern_forward.1} parent=1 // loop_footer_branch
      %11 = sbr.rel target = $region3
    $region8: #{nn_pattern_forward.1} parent=1 // loop_exit
      _
    %649 = vsyncpa [#allocation3], 1
    %s650 = scalar_lea.sflag [#allocation3], 1
    %651 = vsyncpa %s650, 1

</llo_original>
